<compile_context>
chip_gen: v7x
topology: tpu7x:2x2x1
jax: 0.10.0
libtpu: 0.0.40
codegen_flags: <defaults>
</compile_context>

<pallas_src>
import jax
import jax.numpy as jnp
from jax.experimental import pallas as pl
from jax.experimental.pallas import tpu as pltpu

BN_EPS = 1e-5
LANE = 128
SUBLANE = 8
TB_CAP = 2048  # max batch-tile rows


def _cdiv(a, b):
    return -(-a // b)


def _round_up(x, m):
    return _cdiv(x, m) * m


def _pad2(x, rows, cols):
    x = jnp.asarray(x, jnp.float32)
    return jnp.pad(x, ((0, rows - x.shape[0]), (0, cols - x.shape[1])))


def _vmem_budget_bytes():
    """~75% of physical VMEM (v5e/v6e: 128 MiB -> 96 MiB, v7x: 64 MiB -> 48 MiB)."""
    try:
        phys = int(pltpu.get_tpu_info().vmem_capacity_bytes)
    except Exception:
        phys = 64 * 1024 * 1024  # conservative fallback (v7x-sized)
    return (phys * 3) // 4


def _estimate_vmem_bytes(tb, Bp, zp, dp, op, nt, mm_itemsize):
    weights = 2 * (zp * dp + dp * dp + dp * op) * mm_itemsize  # pipeline buffers
    vectors = 2 * (6 * dp + op) * 4
    z_io = 2 * tb * zp * 4
    out_io = 2 * tb * op * 4
    cache = Bp * dp * 4 if nt > 1 else 0
    stats = 4 * dp * 4
    live = 8 * tb * max(zp, dp, op) * 4  # live intermediates / spill headroom
    return weights + vectors + z_io + out_io + cache + stats + live


def _choose_tb(B, zp, dp, op, mm_itemsize, budget):
    """Largest VMEM-feasible batch tile (multiple of 8), minimizing padding waste."""
    nt = max(1, _cdiv(B, TB_CAP))
    tb = _round_up(_cdiv(B, nt), SUBLANE)
    while tb > SUBLANE:
        Bp = _round_up(B, tb)
        if _estimate_vmem_bytes(tb, Bp, zp, dp, op, Bp // tb, mm_itemsize) <= budget:
            break
        nt += 1
        tb = _round_up(_cdiv(B, nt), SUBLANE)
    # TODO(synk): if the (Bp, dp) activation cache alone exceeds VMEM at huge
    # batch*dim, a K-tiled / HBM-cached variant would be needed.
    return tb


# ------------------------------- kernel bodies --------------------------------

def _linear(x, w_ref, b_ref):
    # MXU matmul in the weight storage dtype (f32 or bf16), always f32 accumulate.
    return (jnp.dot(x.astype(w_ref.dtype), w_ref[...],
                    preferred_element_type=jnp.float32) + b_ref[...])


def _prelu(x, a_ref):
    a = a_ref[0]  # scalar read from SMEM
    return jnp.where(x > 0, x, a * x)


def _row_mask(n_rows, row0, true_b):
    ridx = jax.lax.broadcasted_iota(jnp.int32, (n_rows, 1), 0) + row0
    return (ridx < true_b).astype(jnp.float32)


def _make_single_pass_kernel(true_b, need_mask):
    """Whole batch in one tile: one grid step, BN stats computed in place."""
    inv_b = 1.0 / float(true_b)

    def kernel(z_ref, w1_ref, b1_ref, g1_ref, be1_ref,
               w2_ref, b2_ref, g2_ref, be2_ref,
               w3_ref, b3_ref, a1_ref, a2_ref, o_ref):
        rows = z_ref.shape[0]
        mask = _row_mask(rows, 0, true_b) if need_mask else None

        def bn(x, g_ref, be_ref):
            xm = x if mask is None else x * mask
            mean = jnp.sum(xm, axis=0, keepdims=True) * inv_b
            d = x - mean
            dm = d if mask is None else d * mask
            var = jnp.sum(dm * dm, axis=0, keepdims=True) * inv_b
            scale = g_ref[...] * jax.lax.rsqrt(var + BN_EPS)
            shift = be_ref[...] - mean * scale
            return x * scale + shift

        z = z_ref[...].astype(jnp.float32)
        h1 = _prelu(_linear(z, w1_ref, b1_ref), a1_ref)
        y1 = bn(h1, g1_ref, be1_ref)
        h2 = _prelu(_linear(y1, w2_ref, b2_ref), a2_ref)
        y2 = bn(h2, g2_ref, be2_ref)
        o_ref[...] = _linear(y2, w3_ref, b3_ref).astype(o_ref.dtype)

    return kernel


def _make_phased_kernel(true_b, tb, need_mask):
    """3-phase grid for multi-tile batches; each phase does exactly one layer.

    phase 0: layer1 -> cache h1, accumulate BN1 stats
    phase 1: fold BN1 -> scale/shift, layer2 -> cache h2 (reuse), BN2 stats
    phase 2: fold BN2 -> scale/shift, layer3 -> write output
    """
    inv_b = 1.0 / float(true_b)

    def kernel(z_ref, w1_ref, b1_ref, g1_ref, be1_ref,
               w2_ref, b2_ref, g2_ref, be2_ref,
               w3_ref, b3_ref, a1_ref, a2_ref,
               o_ref,
               s_ref, q_ref, sc_ref, sh_ref, h_cache):
        p = pl.program_id(0)  # phase
        i = pl.program_id(1)  # batch tile
        row0 = pl.multiple_of(i * tb, tb)
        tile = pl.ds(row0, tb)
        maskf = _row_mask(tb, row0, true_b) if need_mask else None

        def accumulate(h):
            hm = h if maskf is None else h * maskf
            s_ref[...] += jnp.sum(hm, axis=0, keepdims=True)
            q_ref[...] += jnp.sum(hm * hm, axis=0, keepdims=True)

        def finalize_bn(g_ref, be_ref):
            # TODO(synk): E[x^2]-E[x]^2 in f32 can cancel for large |x| or huge
            # batches; a shifted/Welford accumulation would be safer at scale.
            mean = s_ref[...] * inv_b
            var = jnp.maximum(q_ref[...] * inv_b - mean * mean, 0.0)
            scale = g_ref[...] * jax.lax.rsqrt(var + BN_EPS)
            sc_ref[...] = scale
            sh_ref[...] = be_ref[...] - mean * scale
            s_ref[...] = jnp.zeros_like(s_ref)
            q_ref[...] = jnp.zeros_like(q_ref)

        @pl.when(jnp.logical_and(p == 0, i == 0))
        def _():
            s_ref[...] = jnp.zeros_like(s_ref)
            q_ref[...] = jnp.zeros_like(q_ref)

        @pl.when(p == 0)
        def _():
            h1 = _prelu(_linear(z_ref[...].astype(jnp.float32), w1_ref, b1_ref),
                        a1_ref)
            h_cache[tile, :] = h1  # keep cache in f32: stats match normalized values
            accumulate(h1)

        @pl.when(p == 1)
        def _():
            @pl.when(i == 0)
            def _():
                finalize_bn(g1_ref, be1_ref)
            y1 = h_cache[tile, :] * sc_ref[...] + sh_ref[...]
            h2 = _prelu(_linear(y1, w2_ref, b2_ref), a2_ref)
            h_cache[tile, :] = h2  # h1 no longer needed -> reuse the cache
            accumulate(h2)

        @pl.when(p == 2)
        def _():
            @pl.when(i == 0)
            def _():
                finalize_bn(g2_ref, be2_ref)
            y2 = h_cache[tile, :] * sc_ref[...] + sh_ref[...]
            o_ref[...] = _linear(y2, w3_ref, b3_ref).astype(o_ref.dtype)

    return kernel


# --------------------------------- wrapper ------------------------------------

def generator2_forward(z, params, *, tb=None, matmul_dtype=jnp.bfloat16):
    """z: (B, z_dim) float32.  params: dict from init_params (weights pre-transposed).

    matmul_dtype defaults to bf16 (MXU-native on v5e/v6e/v7x); BN statistics,
    PReLU and all intermediates stay f32.
    """
    B, z_dim = z.shape
    dim = params["w1_t"].shape[1]
    out_features = params["w3_t"].shape[1]  # == 2

    zp = _round_up(z_dim, LANE)
    dp = _round_up(dim, LANE)
    op = _round_up(out_features, LANE)
    mm_itemsize = jnp.dtype(matmul_dtype).itemsize
    budget = _vmem_budget_bytes()

    if tb is None:
        tb = _choose_tb(B, zp, dp, op, mm_itemsize, budget)
    tb = _round_up(min(tb, _round_up(B, SUBLANE)), SUBLANE)
    Bp = _round_up(B, tb)
    nt = Bp // tb
    need_mask = Bp != B  # padded rows must not contaminate the BN sums

    # One-time layout glue: lane-dense zero padding; MXU operands in matmul_dtype.
    z_p = _pad2(z, Bp, zp)
    w1 = _pad2(params["w1_t"], zp, dp).astype(matmul_dtype)
    w2 = _pad2(params["w2_t"], dp, dp).astype(matmul_dtype)
    w3 = _pad2(params["w3_t"], dp, op).astype(matmul_dtype)
    b1, g1, be1 = (_pad2(params[k], 1, dp) for k in ("b1", "g1", "be1"))
    b2, g2, be2 = (_pad2(params[k], 1, dp) for k in ("b2", "g2", "be2"))
    b3 = _pad2(params["b3"], 1, op)
    a1 = jnp.asarray(params["a1"], jnp.float32).reshape(-1)[:1]
    a2 = jnp.asarray(params["a2"], jnp.float32).reshape(-1)[:1]

    smem = pl.BlockSpec(memory_space=pltpu.MemorySpace.SMEM)

    if nt == 1:
        kernel = _make_single_pass_kernel(B, need_mask)
        grid = (1,)
        zmap = lambda i: (0, 0)
        cmap = lambda i: (0, 0)
        omap = lambda i: (0, 0)
        scratch = []
        dims = ("arbitrary",)
    else:
        # TODO(synk): on v7x the second TensorCore stays idle; a core split of the
        # batch-tile axis with a cross-core partial-sum reduction would buy ~2x.
        kernel = _make_phased_kernel(B, tb, need_mask)
        grid = (3, nt)  # (phase, batch tile); phase must stay the outer axis
        # z is only read in phase 0 and the output only written in phase 2:
        # collapse the block index to 0 elsewhere -> no re-DMA of z in later
        # phases and no garbage output writebacks in phases 0/1.
        zmap = lambda p, i: (jnp.where(p == 0, i, 0), 0)
        cmap = lambda p, i: (0, 0)
        omap = lambda p, i: (jnp.where(p == 2, i, 0), 0)
        scratch = ([pltpu.VMEM((1, dp), jnp.float32) for _ in range(4)]
                   + [pltpu.VMEM((Bp, dp), jnp.float32)])  # shared h1/h2 cache
        dims = ("arbitrary", "arbitrary")  # BN stats couple the batch tiles

    in_specs = [
        pl.BlockSpec((tb, zp), zmap),                                  # z tile
        pl.BlockSpec((zp, dp), cmap), pl.BlockSpec((1, dp), cmap),
        pl.BlockSpec((1, dp), cmap), pl.BlockSpec((1, dp), cmap),
        pl.BlockSpec((dp, dp), cmap), pl.BlockSpec((1, dp), cmap),
        pl.BlockSpec((1, dp), cmap), pl.BlockSpec((1, dp), cmap),
        pl.BlockSpec((dp, op), cmap), pl.BlockSpec((1, op), cmap),
        smem, smem,                                                    # PReLU alphas
    ]
    out_specs = pl.BlockSpec((tb, op), omap)

    flops = int(2 * Bp * (zp * dp + dp * dp + dp * op))
    transcendentals = int(2 * dp)  # one rsqrt per feature per BN layer
    weight_bytes = (zp * dp + dp * dp + dp * op) * mm_itemsize
    vec_bytes = (6 * dp + op) * 4
    z_bytes = (Bp + (2 * tb if nt > 1 else 0)) * zp * 4  # block-0 refetch per phase
    bytes_accessed = int(z_bytes + Bp * op * 4 + weight_bytes + vec_bytes)

    out_padded = pl.pallas_call(
        kernel,
        out_shape=jax.ShapeDtypeStruct((Bp, op), jnp.float32),
        grid_spec=pltpu.PrefetchScalarGridSpec(
            num_scalar_prefetch=0,
            grid=grid,
            in_specs=in_specs,
            out_specs=out_specs,
            scratch_shapes=scratch,
        ),
        compiler_params=pltpu.CompilerParams(
            dimension_semantics=dims,
            vmem_limit_bytes=int(budget),
        ),
        cost_estimate=pl.CostEstimate(
            flops=flops, transcendentals=transcendentals,
            bytes_accessed=bytes_accessed),
    )(z_p, w1, b1, g1, be1, w2, b2, g2, be2, w3, b3, a1, a2)

    return out_padded[:B, :out_features]


# ------------------------------ params / reference ----------------------------

def init_params(key, z_dim, dim):
    """Deterministic synthetic init matching Generator2.__init__ shapes."""
    ks = jax.random.split(key, 3)

    def lin(k, fan_in, fan_out):
        bound = 1.0 / jnp.sqrt(fan_in)
        kw, kb = jax.random.split(k)
        w = jax.random.uniform(kw, (fan_out, fan_in), jnp.float32, -bound, bound)
        b = jax.random.uniform(kb, (fan_out,), jnp.float32, -bound, bound)
        return w, b

    w1, b1 = lin(ks[0], z_dim, dim)   # nn.Linear(z_dim, dim)
    w2, b2 = lin(ks[1], dim, dim)     # nn.Linear(dim, dim)
    w3, b3 = lin(ks[2], dim, 2)       # nn.Linear(dim, 2)

    return dict(
        w1_t=w1.T, b1=b1.reshape(1, -1),
        w2_t=w2.T, b2=b2.reshape(1, -1),
        w3_t=w3.T, b3=b3.reshape(1, -1),
        a1=jnp.full((1,), 0.25, jnp.float32),   # PReLU default init
        a2=jnp.full((1,), 0.25, jnp.float32),
        g1=jnp.ones((1, dim), jnp.float32), be1=jnp.zeros((1, dim), jnp.float32),
        g2=jnp.ones((1, dim), jnp.float32), be2=jnp.zeros((1, dim), jnp.float32),
    )


def _reference_forward(z, p):
    """Pure-JAX reference of Generator2.forward (training-mode BN)."""
    def bn(x):
        m = x.mean(0, keepdims=True)
        v = ((x - m) ** 2).mean(0, keepdims=True)
        return (x - m) / jnp.sqrt(v + BN_EPS)

    h = z @ p["w1_t"] + p["b1"]
    h = jnp.where(h > 0, h, p["a1"][0] * h)
    h = bn(h) * p["g1"] + p["be1"]
    h = h @ p["w2_t"] + p["b2"]
    h = jnp.where(h > 0, h, p["a2"][0] * h)
    h = bn(h) * p["g2"] + p["be2"]
    return h @ p["w3_t"] + p["b3"]


if __name__ == "__main__":
    Z_DIM, DIM = 16, 32
    key = jax.random.PRNGKey(0)
    kz, kp = jax.random.split(key)
    params = init_params(kp, Z_DIM, DIM)

    B = 16
    z = jax.random.normal(kz, (B, Z_DIM), jnp.float32)
    ref = _reference_forward(z, params)

    # 1) Single-pass fast path (whole batch in one tile), f32 MXU operands.
    out = jax.block_until_ready(
        generator2_forward(z, params, matmul_dtype=jnp.float32))
    assert out.shape == (B, 2)
    assert bool(jnp.allclose(out, ref, atol=1e-3, rtol=1e-3)), (
        f"single-pass f32 max abs err {float(jnp.max(jnp.abs(out - ref)))}")

    # 2) Multi-tile 3-phase path with non-divisible batch (row-masked BN stats)
    #    and the shared h1/h2 VMEM activation cache, forced small tile.
    B2 = 13
    z2 = z[:B2]
    ref2 = _reference_forward(z2, params)
    out2 = jax.block_until_ready(
        generator2_forward(z2, params, tb=8, matmul_dtype=jnp.float32))
    assert out2.shape == (B2, 2)
    assert bool(jnp.allclose(out2, ref2, atol=1e-3, rtol=1e-3)), (
        f"phased f32 max abs err {float(jnp.max(jnp.abs(out2 - ref2)))}")

    # 3) Default bf16 MXU operands (v5e/v6e/v7x friendly), multi-tile path.
    out3 = jax.block_until_ready(generator2_forward(z, params, tb=8))
    assert out3.shape == (B, 2)
    assert bool(jnp.allclose(out3, ref, atol=2.5e-1, rtol=2.5e-1)), (
        f"bf16 max abs err {float(jnp.max(jnp.abs(out3 - ref)))}")

    print("KERNEL_OK")
</pallas_src>

<mosaic_0001>
module attributes {stable_mosaic.version = 11 : i64} {
  func.func @kernel(%arg0: i32, %arg1: memref<16x128xf32, #tpu.memory_space<vmem>>, %arg2: memref<128x128xf32, #tpu.memory_space<vmem>>, %arg3: memref<1x128xf32, #tpu.memory_space<vmem>>, %arg4: memref<1x128xf32, #tpu.memory_space<vmem>>, %arg5: memref<1x128xf32, #tpu.memory_space<vmem>>, %arg6: memref<128x128xf32, #tpu.memory_space<vmem>>, %arg7: memref<1x128xf32, #tpu.memory_space<vmem>>, %arg8: memref<1x128xf32, #tpu.memory_space<vmem>>, %arg9: memref<1x128xf32, #tpu.memory_space<vmem>>, %arg10: memref<128x128xf32, #tpu.memory_space<vmem>>, %arg11: memref<1x128xf32, #tpu.memory_space<vmem>>, %arg12: memref<1xf32, #tpu.memory_space<smem>>, %arg13: memref<1xf32, #tpu.memory_space<smem>>, %arg14: memref<16x128xf32, #tpu.memory_space<vmem>>) attributes {dimension_semantics = [#tpu.dimension_semantics<arbitrary>], iteration_bounds = array<i64: 1>, scalar_prefetch = 0 : i64, scratch_operands = 0 : i64, tpu.core_type = #tpu.core_type<tc>, window_params = [{pipeline_mode = #tpu.pipeline_mode<synchronous>, transform_indices = @transform_0, window_bounds = array<i64: 16, 128>}, {pipeline_mode = #tpu.pipeline_mode<synchronous>, transform_indices = @transform_1, window_bounds = array<i64: 128, 128>}, {pipeline_mode = #tpu.pipeline_mode<synchronous>, transform_indices = @transform_2, window_bounds = array<i64: 1, 128>}, {pipeline_mode = #tpu.pipeline_mode<synchronous>, transform_indices = @transform_3, window_bounds = array<i64: 1, 128>}, {pipeline_mode = #tpu.pipeline_mode<synchronous>, transform_indices = @transform_4, window_bounds = array<i64: 1, 128>}, {pipeline_mode = #tpu.pipeline_mode<synchronous>, transform_indices = @transform_5, window_bounds = array<i64: 128, 128>}, {pipeline_mode = #tpu.pipeline_mode<synchronous>, transform_indices = @transform_6, window_bounds = array<i64: 1, 128>}, {pipeline_mode = #tpu.pipeline_mode<synchronous>, transform_indices = @transform_7, window_bounds = array<i64: 1, 128>}, {pipeline_mode = #tpu.pipeline_mode<synchronous>, transform_indices = @transform_8, window_bounds = array<i64: 1, 128>}, {pipeline_mode = #tpu.pipeline_mode<synchronous>, transform_indices = @transform_9, window_bounds = array<i64: 128, 128>}, {pipeline_mode = #tpu.pipeline_mode<synchronous>, transform_indices = @transform_10, window_bounds = array<i64: 1, 128>}, {transform_indices = @transform_11, window_bounds = array<i64: 1>}, {transform_indices = @transform_12, window_bounds = array<i64: 1>}, {pipeline_mode = #tpu.pipeline_mode<synchronous>, transform_indices = @transform_13, window_bounds = array<i64: 16, 128>}]} {
    %c0 = arith.constant 0 : index
    %c0_0 = arith.constant 0 : index
    %0 = vector.load %arg1[%c0, %c0_0] : memref<16x128xf32, #tpu.memory_space<vmem>>, vector<16x128xf32>
    %c0_1 = arith.constant 0 : index
    %c0_2 = arith.constant 0 : index
    %1 = vector.load %arg2[%c0_1, %c0_2] : memref<128x128xf32, #tpu.memory_space<vmem>>, vector<128x128xf32>
    %cst = arith.constant dense<0.000000e+00> : vector<16x128xf32>
    %2 = tpu.matmul %0, %1, %cst {dimension_numbers = #tpu.dot_dimension_numbers<[1], [0], [0], [1], [0, 0, 1, 1], [], []>} : vector<16x128xf32>, vector<128x128xf32>, vector<16x128xf32> -> vector<16x128xf32>
    %c0_3 = arith.constant 0 : index
    %c0_4 = arith.constant 0 : index
    %3 = vector.load %arg3[%c0_3, %c0_4] : memref<1x128xf32, #tpu.memory_space<vmem>>, vector<1x128xf32>
    %4 = vector.broadcast %3 : vector<1x128xf32> to vector<16x128xf32>
    %5 = arith.addf %2, %4 : vector<16x128xf32>
    %c0_5 = arith.constant 0 : index
    %6 = memref.load %arg12[%c0_5] : memref<1xf32, #tpu.memory_space<smem>>
    %cst_6 = arith.constant 0.000000e+00 : f32
    %7 = vector.broadcast %cst_6 : f32 to vector<16x128xf32>
    %8 = arith.cmpf ogt, %5, %7 : vector<16x128xf32>
    %9 = vector.broadcast %6 : f32 to vector<16x128xf32>
    %10 = arith.mulf %9, %5 : vector<16x128xf32>
    %11 = arith.select %8, %5, %10 : vector<16x128xi1>, vector<16x128xf32>
    %cst_7 = arith.constant dense<0.000000e+00> : vector<128xf32>
    %12 = vector.multi_reduction <add>, %11, %cst_7 [0] : vector<16x128xf32> to vector<128xf32>
    %13 = vector.shape_cast %12 : vector<128xf32> to vector<1x128xf32>
    %cst_8 = arith.constant 6.250000e-02 : f32
    %14 = vector.broadcast %cst_8 : f32 to vector<1x128xf32>
    %15 = arith.mulf %13, %14 : vector<1x128xf32>
    %16 = vector.broadcast %15 : vector<1x128xf32> to vector<16x128xf32>
    %17 = arith.subf %11, %16 : vector<16x128xf32>
    %18 = arith.mulf %17, %17 : vector<16x128xf32>
    %cst_9 = arith.constant dense<0.000000e+00> : vector<128xf32>
    %19 = vector.multi_reduction <add>, %18, %cst_9 [0] : vector<16x128xf32> to vector<128xf32>
    %20 = vector.shape_cast %19 : vector<128xf32> to vector<1x128xf32>
    %cst_10 = arith.constant 6.250000e-02 : f32
    %21 = vector.broadcast %cst_10 : f32 to vector<1x128xf32>
    %22 = arith.mulf %20, %21 : vector<1x128xf32>
    %c0_11 = arith.constant 0 : index
    %c0_12 = arith.constant 0 : index
    %23 = vector.load %arg4[%c0_11, %c0_12] : memref<1x128xf32, #tpu.memory_space<vmem>>, vector<1x128xf32>
    %cst_13 = arith.constant 9.99999974E-6 : f32
    %24 = vector.broadcast %cst_13 : f32 to vector<1x128xf32>
    %25 = arith.addf %22, %24 : vector<1x128xf32>
    %26 = math.rsqrt %25 : vector<1x128xf32>
    %27 = arith.mulf %23, %26 : vector<1x128xf32>
    %c0_14 = arith.constant 0 : index
    %c0_15 = arith.constant 0 : index
    %28 = vector.load %arg5[%c0_14, %c0_15] : memref<1x128xf32, #tpu.memory_space<vmem>>, vector<1x128xf32>
    %29 = arith.mulf %15, %27 : vector<1x128xf32>
    %30 = arith.subf %28, %29 : vector<1x128xf32>
    %31 = vector.broadcast %27 : vector<1x128xf32> to vector<16x128xf32>
    %32 = arith.mulf %11, %31 : vector<16x128xf32>
    %33 = vector.broadcast %30 : vector<1x128xf32> to vector<16x128xf32>
    %34 = arith.addf %32, %33 : vector<16x128xf32>
    %c0_16 = arith.constant 0 : index
    %c0_17 = arith.constant 0 : index
    %35 = vector.load %arg6[%c0_16, %c0_17] : memref<128x128xf32, #tpu.memory_space<vmem>>, vector<128x128xf32>
    %cst_18 = arith.constant dense<0.000000e+00> : vector<16x128xf32>
    %36 = tpu.matmul %34, %35, %cst_18 {dimension_numbers = #tpu.dot_dimension_numbers<[1], [0], [0], [1], [0, 0, 1, 1], [], []>} : vector<16x128xf32>, vector<128x128xf32>, vector<16x128xf32> -> vector<16x128xf32>
    %c0_19 = arith.constant 0 : index
    %c0_20 = arith.constant 0 : index
    %37 = vector.load %arg7[%c0_19, %c0_20] : memref<1x128xf32, #tpu.memory_space<vmem>>, vector<1x128xf32>
    %38 = vector.broadcast %37 : vector<1x128xf32> to vector<16x128xf32>
    %39 = arith.addf %36, %38 : vector<16x128xf32>
    %c0_21 = arith.constant 0 : index
    %40 = memref.load %arg13[%c0_21] : memref<1xf32, #tpu.memory_space<smem>>
    %cst_22 = arith.constant 0.000000e+00 : f32
    %41 = vector.broadcast %cst_22 : f32 to vector<16x128xf32>
    %42 = arith.cmpf ogt, %39, %41 : vector<16x128xf32>
    %43 = vector.broadcast %40 : f32 to vector<16x128xf32>
    %44 = arith.mulf %43, %39 : vector<16x128xf32>
    %45 = arith.select %42, %39, %44 : vector<16x128xi1>, vector<16x128xf32>
    %cst_23 = arith.constant dense<0.000000e+00> : vector<128xf32>
    %46 = vector.multi_reduction <add>, %45, %cst_23 [0] : vector<16x128xf32> to vector<128xf32>
    %47 = vector.shape_cast %46 : vector<128xf32> to vector<1x128xf32>
    %cst_24 = arith.constant 6.250000e-02 : f32
    %48 = vector.broadcast %cst_24 : f32 to vector<1x128xf32>
    %49 = arith.mulf %47, %48 : vector<1x128xf32>
    %50 = vector.broadcast %49 : vector<1x128xf32> to vector<16x128xf32>
    %51 = arith.subf %45, %50 : vector<16x128xf32>
    %52 = arith.mulf %51, %51 : vector<16x128xf32>
    %cst_25 = arith.constant dense<0.000000e+00> : vector<128xf32>
    %53 = vector.multi_reduction <add>, %52, %cst_25 [0] : vector<16x128xf32> to vector<128xf32>
    %54 = vector.shape_cast %53 : vector<128xf32> to vector<1x128xf32>
    %cst_26 = arith.constant 6.250000e-02 : f32
    %55 = vector.broadcast %cst_26 : f32 to vector<1x128xf32>
    %56 = arith.mulf %54, %55 : vector<1x128xf32>
    %c0_27 = arith.constant 0 : index
    %c0_28 = arith.constant 0 : index
    %57 = vector.load %arg8[%c0_27, %c0_28] : memref<1x128xf32, #tpu.memory_space<vmem>>, vector<1x128xf32>
    %cst_29 = arith.constant 9.99999974E-6 : f32
    %58 = vector.broadcast %cst_29 : f32 to vector<1x128xf32>
    %59 = arith.addf %56, %58 : vector<1x128xf32>
    %60 = math.rsqrt %59 : vector<1x128xf32>
    %61 = arith.mulf %57, %60 : vector<1x128xf32>
    %c0_30 = arith.constant 0 : index
    %c0_31 = arith.constant 0 : index
    %62 = vector.load %arg9[%c0_30, %c0_31] : memref<1x128xf32, #tpu.memory_space<vmem>>, vector<1x128xf32>
    %63 = arith.mulf %49, %61 : vector<1x128xf32>
    %64 = arith.subf %62, %63 : vector<1x128xf32>
    %65 = vector.broadcast %61 : vector<1x128xf32> to vector<16x128xf32>
    %66 = arith.mulf %45, %65 : vector<16x128xf32>
    %67 = vector.broadcast %64 : vector<1x128xf32> to vector<16x128xf32>
    %68 = arith.addf %66, %67 : vector<16x128xf32>
    %c0_32 = arith.constant 0 : index
    %c0_33 = arith.constant 0 : index
    %69 = vector.load %arg10[%c0_32, %c0_33] : memref<128x128xf32, #tpu.memory_space<vmem>>, vector<128x128xf32>
    %cst_34 = arith.constant dense<0.000000e+00> : vector<16x128xf32>
    %70 = tpu.matmul %68, %69, %cst_34 {dimension_numbers = #tpu.dot_dimension_numbers<[1], [0], [0], [1], [0, 0, 1, 1], [], []>} : vector<16x128xf32>, vector<128x128xf32>, vector<16x128xf32> -> vector<16x128xf32>
    %c0_35 = arith.constant 0 : index
    %c0_36 = arith.constant 0 : index
    %71 = vector.load %arg11[%c0_35, %c0_36] : memref<1x128xf32, #tpu.memory_space<vmem>>, vector<1x128xf32>
    %72 = vector.broadcast %71 : vector<1x128xf32> to vector<16x128xf32>
    %73 = arith.addf %70, %72 : vector<16x128xf32>
    %c0_37 = arith.constant 0 : index
    %c0_38 = arith.constant 0 : index
    %74 = vector.load %arg14[%c0_37, %c0_38] : memref<16x128xf32, #tpu.memory_space<vmem>>, vector<16x128xf32>
    tpu.vector_store %arg14[%c0_37, %c0_38], %73 {strides = array<i32>} : memref<16x128xf32, #tpu.memory_space<vmem>>, vector<16x128xf32>,
    return
  }
  func.func @transform_0(%arg0: i32) -> (i32, i32) {
    %c0_i32 = arith.constant 0 : i32
    %c0_i32_0 = arith.constant 0 : i32
    %c0_i32_1 = arith.constant 0 : i32
    return %c0_i32, %c0_i32_0 : i32, i32
  }
  func.func @transform_1(%arg0: i32) -> (i32, i32) {
    %c0_i32 = arith.constant 0 : i32
    %c0_i32_0 = arith.constant 0 : i32
    %c0_i32_1 = arith.constant 0 : i32
    return %c0_i32, %c0_i32_0 : i32, i32
  }
  func.func @transform_2(%arg0: i32) -> (i32, i32) {
    %c0_i32 = arith.constant 0 : i32
    %c0_i32_0 = arith.constant 0 : i32
    %c0_i32_1 = arith.constant 0 : i32
    return %c0_i32, %c0_i32_0 : i32, i32
  }
  func.func @transform_3(%arg0: i32) -> (i32, i32) {
    %c0_i32 = arith.constant 0 : i32
    %c0_i32_0 = arith.constant 0 : i32
    %c0_i32_1 = arith.constant 0 : i32
    return %c0_i32, %c0_i32_0 : i32, i32
  }
  func.func @transform_4(%arg0: i32) -> (i32, i32) {
    %c0_i32 = arith.constant 0 : i32
    %c0_i32_0 = arith.constant 0 : i32
    %c0_i32_1 = arith.constant 0 : i32
    return %c0_i32, %c0_i32_0 : i32, i32
  }
  func.func @transform_5(%arg0: i32) -> (i32, i32) {
    %c0_i32 = arith.constant 0 : i32
    %c0_i32_0 = arith.constant 0 : i32
    %c0_i32_1 = arith.constant 0 : i32
    return %c0_i32, %c0_i32_0 : i32, i32
  }
  func.func @transform_6(%arg0: i32) -> (i32, i32) {
    %c0_i32 = arith.constant 0 : i32
    %c0_i32_0 = arith.constant 0 : i32
    %c0_i32_1 = arith.constant 0 : i32
    return %c0_i32, %c0_i32_0 : i32, i32
  }
  func.func @transform_7(%arg0: i32) -> (i32, i32) {
    %c0_i32 = arith.constant 0 : i32
    %c0_i32_0 = arith.constant 0 : i32
    %c0_i32_1 = arith.constant 0 : i32
    return %c0_i32, %c0_i32_0 : i32, i32
  }
  func.func @transform_8(%arg0: i32) -> (i32, i32) {
    %c0_i32 = arith.constant 0 : i32
    %c0_i32_0 = arith.constant 0 : i32
    %c0_i32_1 = arith.constant 0 : i32
    return %c0_i32, %c0_i32_0 : i32, i32
  }
  func.func @transform_9(%arg0: i32) -> (i32, i32) {
    %c0_i32 = arith.constant 0 : i32
    %c0_i32_0 = arith.constant 0 : i32
    %c0_i32_1 = arith.constant 0 : i32
    return %c0_i32, %c0_i32_0 : i32, i32
  }
  func.func @transform_10(%arg0: i32) -> (i32, i32) {
    %c0_i32 = arith.constant 0 : i32
    %c0_i32_0 = arith.constant 0 : i32
    %c0_i32_1 = arith.constant 0 : i32
    return %c0_i32, %c0_i32_0 : i32, i32
  }
  func.func @transform_11(%arg0: i32) -> i32 {
    %c0_i32 = arith.constant 0 : i32
    %c0_i32_0 = arith.constant 0 : i32
    return %c0_i32 : i32
  }
  func.func @transform_12(%arg0: i32) -> i32 {
    %c0_i32 = arith.constant 0 : i32
    %c0_i32_0 = arith.constant 0 : i32
    return %c0_i32 : i32
  }
  func.func @transform_13(%arg0: i32) -> (i32, i32) {
    %c0_i32 = arith.constant 0 : i32
    %c0_i32_0 = arith.constant 0 : i32
    %c0_i32_1 = arith.constant 0 : i32
    return %c0_i32, %c0_i32_0 : i32, i32
  }
}

</mosaic_0001>

<llo_original>
// kernel: tpu_custom_call.1
$region0: #{tpu_custom_call.1}
  #allocation0 [shape = 'u32[]', space=smem, size = 0x4, offset = 0x4, fixed_abs, tag = 'smem constant byte address 0x4 - core index']
  #allocation1 [shape = 'u32[144,128]{1,0:T(1,128)}', space=vmem, size = 0x12000, scoped, tag = 'internal scratch']
  #allocation2 [shape = 'f32[1]{0:T(128)S(6)}', space=smem, size = 0x200, scoped, tag = 'scoped memory for tpu_custom_call.1']
  #allocation3 [shape = 'f32[1]{0:T(128)S(6)}', space=smem, size = 0x200, scoped, tag = 'scoped memory for tpu_custom_call.1']
  %s0 = inlined_call_operand.hbm [shape: f32[16,128], index: 0, kind: input, shape index: {}]
  %s1 = inlined_call_operand.hbm [shape: f32[128,128], index: 1, kind: input, shape index: {}]
  %s2 = inlined_call_operand.vmem [shape: f32[1,128], index: 2, kind: input, shape index: {}]
  %s3 = inlined_call_operand.vmem [shape: f32[1,128], index: 3, kind: input, shape index: {}]
  %s4 = inlined_call_operand.vmem [shape: f32[1,128], index: 4, kind: input, shape index: {}]
  %s5 = inlined_call_operand.hbm [shape: f32[128,128], index: 5, kind: input, shape index: {}]
  %s6 = inlined_call_operand.vmem [shape: f32[1,128], index: 6, kind: input, shape index: {}]
  %s7 = inlined_call_operand.vmem [shape: f32[1,128], index: 7, kind: input, shape index: {}]
  %s8 = inlined_call_operand.vmem [shape: f32[1,128], index: 8, kind: input, shape index: {}]
  %s9 = inlined_call_operand.hbm [shape: f32[128,128], index: 9, kind: input, shape index: {}]
  %s10 = inlined_call_operand.vmem [shape: f32[1,128], index: 10, kind: input, shape index: {}]
  %s11 = inlined_call_operand.<no memory space> [shape: f32[1], index: 11, kind: input, shape index: {}]
  %s12 = inlined_call_operand.<no memory space> [shape: f32[1], index: 12, kind: input, shape index: {}]
  %s13 = inlined_call_operand.hbm [shape: f32[16,128], index: 13, kind: output, shape index: {}]
  %s14 = sld [smem:[#allocation0]]
  $region78: #{tpu_custom_call.1} parent=0
    _
  %s16 = ssub.s32 1, %s14
  %s17 = scalar_select 0, %s16, %s14
  %18 = sst [smem:[#allocation2]] %s11
  %19 = sst [smem:[#allocation3]] %s12
  $region1: #{tpu_custom_call.1} parent=0
    #allocation4 [shape = 'u8[8192]{0}', space=vmem, size = 0x2000, scoped, tag = 'input window, operand 0, single buffered']
    #allocation5 [shape = 's32[1]{0}', space=sflag, size = 0x4, scoped, tag = 'scoped memory for tpu_custom_call.1']
    #allocation6 [shape = 's32[1]{0}', space=sflag, size = 0x4, scoped, tag = 'scoped memory for tpu_custom_call.1']
    #allocation7 [shape = 'u8[65536]{0}', space=vmem, size = 0x10000, scoped, tag = 'input window, operand 1, single buffered']
    #allocation8 [shape = 's32[1]{0}', space=sflag, size = 0x4, scoped, tag = 'scoped memory for tpu_custom_call.1']
    #allocation9 [shape = 'u8[65536]{0}', space=vmem, size = 0x10000, scoped, tag = 'input window, operand 5, single buffered']
    #allocation10 [shape = 'u8[65536]{0}', space=vmem, size = 0x10000, scoped, tag = 'input window, operand 9, single buffered']
    #allocation11 [shape = 's32[1]{0}', space=sflag, size = 0x4, scoped, tag = 'scoped memory for tpu_custom_call.1']
    #allocation12 [shape = 'u8[8192]{0}', space=vmem, size = 0x2000, scoped, tag = 'output window, operand 0, single buffered']
    %20 = vsyncpa [#allocation5], 0
    %21 = vsyncpa [#allocation8], 0
    %22 = vsyncpa [#allocation11], 0
    %23 = vsyncpa [#allocation6], 0
    // Predicated region
    $region2: #{tpu_custom_call.1} parent=1 // pred_check
      _
    $region3: #{tpu_custom_call.1} parent=1 // pred_check_branch
      %25 = sbr.rel (0) target = $region5
    $region4: #{tpu_custom_call.1} parent=1 // pred_region
      %s27 = ssub.s32 256, 256
      %28 = vsyncadd [#allocation5], %s27
      %s29 = sshll.u32 [#allocation4], 4
      %s30 = int_to_ptr.vmem [resolvable:$true] %s29
      %35 = dma.hbm_to_vmem [thread:$0]  %s0, 256, %s30, [#allocation5], 128, 128, 8
    $region5: #{tpu_custom_call.1} parent=1 // pred_fallthru
      _
    // Predicated region
    $region6: #{tpu_custom_call.1} parent=1 // pred_check
      _
    $region7: #{tpu_custom_call.1} parent=1 // pred_check_branch
      %37 = sbr.rel (0) target = $region9
    $region8: #{tpu_custom_call.1} parent=1 // pred_region
      %s39 = ssub.s32 2048, 2048
      %40 = vsyncadd [#allocation8], %s39
      %s41 = sshll.u32 [#allocation7], 4
      %s42 = int_to_ptr.vmem [resolvable:$true] %s41
      %47 = dma.hbm_to_vmem [thread:$0]  %s1, 2048, %s42, [#allocation8], 128, 128, 8
    $region9: #{tpu_custom_call.1} parent=1 // pred_fallthru
      _
    // Predicated region
    $region10: #{tpu_custom_call.1} parent=1 // pred_check
      _
    $region11: #{tpu_custom_call.1} parent=1 // pred_check_branch
      %49 = sbr.rel (0) target = $region13
    $region12: #{tpu_custom_call.1} parent=1 // pred_region
      _
    $region13: #{tpu_custom_call.1} parent=1 // pred_fallthru
      _
    // Predicated region
    $region14: #{tpu_custom_call.1} parent=1 // pred_check
      _
    $region15: #{tpu_custom_call.1} parent=1 // pred_check_branch
      %51 = sbr.rel (0) target = $region17
    $region16: #{tpu_custom_call.1} parent=1 // pred_region
      _
    $region17: #{tpu_custom_call.1} parent=1 // pred_fallthru
      _
    // Predicated region
    $region18: #{tpu_custom_call.1} parent=1 // pred_check
      _
    $region19: #{tpu_custom_call.1} parent=1 // pred_check_branch
      %53 = sbr.rel (0) target = $region21
    $region20: #{tpu_custom_call.1} parent=1 // pred_region
      _
    $region21: #{tpu_custom_call.1} parent=1 // pred_fallthru
      _
    // Predicated region
    $region22: #{tpu_custom_call.1} parent=1 // pred_check
      _
    $region23: #{tpu_custom_call.1} parent=1 // pred_check_branch
      %55 = sbr.rel (0) target = $region25
    $region24: #{tpu_custom_call.1} parent=1 // pred_region
      %s57 = ssub.s32 2048, 2048
      %58 = vsyncadd [#allocation8], %s57
      %s59 = sshll.u32 [#allocation9], 4
      %s60 = int_to_ptr.vmem [resolvable:$true] %s59
      %65 = dma.hbm_to_vmem [thread:$0]  %s5, 2048, %s60, [#allocation8], 128, 128, 8
    $region25: #{tpu_custom_call.1} parent=1 // pred_fallthru
      _
    // Predicated region
    $region26: #{tpu_custom_call.1} parent=1 // pred_check
      _
    $region27: #{tpu_custom_call.1} parent=1 // pred_check_branch
      %67 = sbr.rel (0) target = $region29
    $region28: #{tpu_custom_call.1} parent=1 // pred_region
      _
    $region29: #{tpu_custom_call.1} parent=1 // pred_fallthru
      _
    // Predicated region
    $region30: #{tpu_custom_call.1} parent=1 // pred_check
      _
    $region31: #{tpu_custom_call.1} parent=1 // pred_check_branch
      %69 = sbr.rel (0) target = $region33
    $region32: #{tpu_custom_call.1} parent=1 // pred_region
      _
    $region33: #{tpu_custom_call.1} parent=1 // pred_fallthru
      _
    // Predicated region
    $region34: #{tpu_custom_call.1} parent=1 // pred_check
      _
    $region35: #{tpu_custom_call.1} parent=1 // pred_check_branch
      %71 = sbr.rel (0) target = $region37
    $region36: #{tpu_custom_call.1} parent=1 // pred_region
      _
    $region37: #{tpu_custom_call.1} parent=1 // pred_fallthru
      _
    // Predicated region
    $region38: #{tpu_custom_call.1} parent=1 // pred_check
      _
    $region39: #{tpu_custom_call.1} parent=1 // pred_check_branch
      %73 = sbr.rel (0) target = $region41
    $region40: #{tpu_custom_call.1} parent=1 // pred_region
      %s75 = ssub.s32 2048, 2048
      %76 = vsyncadd [#allocation11], %s75
      %s77 = sshll.u32 [#allocation10], 4
      %s78 = int_to_ptr.vmem [resolvable:$true] %s77
      %83 = dma.hbm_to_vmem [thread:$0]  %s9, 2048, %s78, [#allocation11], 128, 128, 8
    $region41: #{tpu_custom_call.1} parent=1 // pred_fallthru
      _
    // Predicated region
    $region42: #{tpu_custom_call.1} parent=1 // pred_check
      _
    $region43: #{tpu_custom_call.1} parent=1 // pred_check_branch
      %85 = sbr.rel (0) target = $region45
    $region44: #{tpu_custom_call.1} parent=1 // pred_region
      _
    $region45: #{tpu_custom_call.1} parent=1 // pred_fallthru
      _
    // Predicated region
    $region46: #{tpu_custom_call.1} parent=1 // pred_check
      _
    $region47: #{tpu_custom_call.1} parent=1 // pred_check_branch
      %87 = sbr.rel (0) target = $region49
    $region48: #{tpu_custom_call.1} parent=1 // pred_region
      _
    $region49: #{tpu_custom_call.1} parent=1 // pred_fallthru
      _
    // Predicated region
    $region50: #{tpu_custom_call.1} parent=1 // pred_check
      _
    $region51: #{tpu_custom_call.1} parent=1 // pred_check_branch
      %89 = sbr.rel (0) target = $region53
    $region52: #{tpu_custom_call.1} parent=1 // pred_region
      _
    $region53: #{tpu_custom_call.1} parent=1 // pred_fallthru
      _
    // Predicated region
    $region54: #{tpu_custom_call.1} parent=1 // pred_check
      _
    $region55: #{tpu_custom_call.1} parent=1 // pred_check_branch
      %91 = sbr.rel (0) target = $region57
    $region56: #{tpu_custom_call.1} parent=1 // pred_region
      %92 = dma.done [#allocation5], 256
    $region57: #{tpu_custom_call.1} parent=1 // pred_fallthru
      _
    // Predicated region
    $region58: #{tpu_custom_call.1} parent=1 // pred_check
      _
    $region59: #{tpu_custom_call.1} parent=1 // pred_check_branch
      %94 = sbr.rel (0) target = $region61
    $region60: #{tpu_custom_call.1} parent=1 // pred_region
      %95 = dma.done [#allocation8], 2048
    $region61: #{tpu_custom_call.1} parent=1 // pred_fallthru
      _
    // Predicated region
    $region62: #{tpu_custom_call.1} parent=1 // pred_check
      _
    $region63: #{tpu_custom_call.1} parent=1 // pred_check_branch
      %97 = sbr.rel (0) target = $region65
    $region64: #{tpu_custom_call.1} parent=1 // pred_region
      %98 = dma.done [#allocation8], 2048
    $region65: #{tpu_custom_call.1} parent=1 // pred_fallthru
      _
    // Predicated region
    $region66: #{tpu_custom_call.1} parent=1 // pred_check
      _
    $region67: #{tpu_custom_call.1} parent=1 // pred_check_branch
      %100 = sbr.rel (0) target = $region69
    $region68: #{tpu_custom_call.1} parent=1 // pred_region
      %101 = dma.done [#allocation11], 2048
    $region69: #{tpu_custom_call.1} parent=1 // pred_fallthru
      _
    %v102 = vld [vmem:[#allocation4] sm:$0xff]
    %v103 = vld [vmem:[#allocation4 + $0x8] sm:$0xff]
    %v104 = vld [vmem:[#allocation7] sm:$0xff]
    %v105 = vld [vmem:[#allocation7 + $0x8] sm:$0xff]
    %v106 = vld [vmem:[#allocation7 + $0x10] sm:$0xff]
    %v107 = vld [vmem:[#allocation7 + $0x18] sm:$0xff]
    %v108 = vld [vmem:[#allocation7 + $0x20] sm:$0xff]
    %v109 = vld [vmem:[#allocation7 + $0x28] sm:$0xff]
    %v110 = vld [vmem:[#allocation7 + $0x30] sm:$0xff]
    %v111 = vld [vmem:[#allocation7 + $0x38] sm:$0xff]
    %v112 = vld [vmem:[#allocation7 + $0x40] sm:$0xff]
    %v113 = vld [vmem:[#allocation7 + $0x48] sm:$0xff]
    %v114 = vld [vmem:[#allocation7 + $0x50] sm:$0xff]
    %v115 = vld [vmem:[#allocation7 + $0x58] sm:$0xff]
    %v116 = vld [vmem:[#allocation7 + $0x60] sm:$0xff]
    %v117 = vld [vmem:[#allocation7 + $0x68] sm:$0xff]
    %v118 = vld [vmem:[#allocation7 + $0x70] sm:$0xff]
    %v119 = vld [vmem:[#allocation7 + $0x78] sm:$0xff]
    %v120 = vld [vmem:[%s2] sm:$0x1]
    %v122 = vlaneseq
    %v123 = vshrl.u32 %v122, 7
    %v124 = vsub.s32 0, %v123
    %v125 = vrot.slane %v120, %v124
    %127 = vmatprep.subr.mxu0 0.0
    %128 = vmatpush1.msra.mxu0 %v104
    %129 = vmatprep.subr.mxu0 0.0
    %130 = vmatpush1.msra.mxu0 %v105
    %131 = vmatprep.subr.mxu0 0.0
    %132 = vmatpush1.msra.mxu0 %v106
    %133 = vmatprep.subr.mxu0 0.0
    %134 = vmatpush1.msra.mxu0 %v107
    %135 = vmatprep.subr.mxu0 0.0
    %136 = vmatpush1.msra.mxu0 %v108
    %137 = vmatprep.subr.mxu0 0.0
    %138 = vmatpush1.msra.mxu0 %v109
    %139 = vmatprep.subr.mxu0 0.0
    %140 = vmatpush1.msra.mxu0 %v110
    %141 = vmatprep.subr.mxu0 0.0
    %142 = vmatpush1.msra.mxu0 %v111
    %143 = vmatprep.subr.mxu0 0.0
    %144 = vmatpush1.msra.mxu0 %v112
    %145 = vmatprep.subr.mxu0 0.0
    %146 = vmatpush1.msra.mxu0 %v113
    %147 = vmatprep.subr.mxu0 0.0
    %148 = vmatpush1.msra.mxu0 %v114
    %149 = vmatprep.subr.mxu0 0.0
    %150 = vmatpush1.msra.mxu0 %v115
    %151 = vmatprep.subr.mxu0 0.0
    %152 = vmatpush1.msra.mxu0 %v116
    %153 = vmatprep.subr.mxu0 0.0
    %154 = vmatpush1.msra.mxu0 %v117
    %155 = vmatprep.subr.mxu0 0.0
    %156 = vmatpush1.msra.mxu0 %v118
    %157 = vmatprep.subr.mxu0 0.0
    %158 = vmatpush1.msra.mxu0 %v119
    %159 = vmatprep.subr.mxu0 0.0
    %160 = vmatpush1.msra.mxu0 0.0
    %161 = vmatprep.subr.mxu0 0.0
    %162 = vmatpush1.msra.mxu0 0.0
    %163 = vmatprep.subr.mxu0 0.0
    %164 = vmatpush1.msra.mxu0 0.0
    %165 = vmatprep.subr.mxu0 0.0
    %166 = vmatpush1.msra.mxu0 0.0
    %167 = vmatprep.subr.mxu0 0.0
    %168 = vmatpush1.msra.mxu0 0.0
    %169 = vmatprep.subr.mxu0 0.0
    %170 = vmatpush1.msra.mxu0 0.0
    %171 = vmatprep.subr.mxu0 0.0
    %172 = vmatpush1.msra.mxu0 0.0
    %173 = vmatprep.subr.mxu0 0.0
    %174 = vmatpush1.msra.mxu0 0.0
    %175 = vmatprep.subr.mxu0 0.0
    %176 = vmatpush1.msra.mxu0 0.0
    %177 = vmatprep.subr.mxu0 0.0
    %178 = vmatpush1.msra.mxu0 0.0
    %179 = vmatprep.subr.mxu0 0.0
    %180 = vmatpush1.msra.mxu0 0.0
    %181 = vmatprep.subr.mxu0 0.0
    %182 = vmatpush1.msra.mxu0 0.0
    %183 = vmatprep.subr.mxu0 0.0
    %184 = vmatpush1.msra.mxu0 0.0
    %185 = vmatprep.subr.mxu0 0.0
    %186 = vmatpush1.msra.mxu0 0.0
    %187 = vmatprep.subr.mxu0 0.0
    %188 = vmatpush1.msra.mxu0 0.0
    %189 = vmatprep.subr.mxu0 0.0
    %190 = vmatpush1.msra.mxu0 0.0
    %191 = vmatprep.mubr.f32.mxu0 0.0
    %192 = vmatmul.mubr.f32.gmra.mrb[0].mxu0 %v102
    %v193 = vpop.f32.mrb[0].mxu0
    %v194 = vadd.f32 %v125, %v193
    %v195 = vpop.f32.mrb[0].mxu0
    %196 = vmatprep.mubr.f32.mxu0 0.0
    %197 = vmatmul.mubr.f32.gmra.mrb[0].mxu0 %v103
    %v198 = vpop.f32.mrb[0].mxu0
    %v199 = vadd.f32 %v125, %v198
    %v200 = vpop.f32.mrb[0].mxu0
    %201 = vdwg.mxu0
    %s202 = sld [smem:[#allocation2]]
    %vm203 = vcmp.gt.f32.partialorder %v194, 0.0
    %vm204 = vcmp.gt.f32.partialorder %v199, 0.0
    %v205 = vstv %s202
    %v206 = vmul.f32 %v205, %v194
    %v207 = vmul.f32 %v205, %v199
    %v208 = vsel %vm203, %v194, %v206
    %v209 = vsel %vm204, %v199, %v207
    %v210 = vadd.f32 %v208, %v209
    %v211 = vrot.slane %v210, 4
    %v212 = vadd.f32 %v210, %v211
    %v213 = vrot.slane %v212, 2
    %v214 = vadd.f32 %v212, %v213
    %v215 = vrot.slane %v214, 1
    %v216 = vadd.f32 %v214, %v215
    %v217 = vmul.f32 %v216, 0.0625
    %v218 = vsub.f32 %v208, %v217
    %v219 = vsub.f32 %v209, %v217
    %v220 = vmul.f32 %v218, %v218
    %v221 = vmul.f32 %v219, %v219
    %v222 = vadd.f32 %v220, %v221
    %v223 = vrot.slane %v222, 4
    %v224 = vadd.f32 %v222, %v223
    %v225 = vrot.slane %v224, 2
    %v226 = vadd.f32 %v224, %v225
    %v227 = vrot.slane %v226, 1
    %v228 = vadd.f32 %v226, %v227
    %v229 = vmul.f32 %v228, 0.0625
    %v230 = vld [vmem:[%s3] sm:$0x1]
    %v231 = vadd.f32 %v229, 1e-05
    %v232 = vrsqrt.pop %v231
    %v233 = vmul.f32 %v230, %v232
    %v234 = vld [vmem:[%s4] sm:$0x1]
    %v235 = vmul.f32 %v217, %v233
    %v236 = vsub.f32 %v234, %v235
    %v238 = vlaneseq
    %v239 = vshrl.u32 %v238, 7
    %v240 = vsub.s32 0, %v239
    %v241 = vrot.slane %v233, %v240
    %v243 = vmul.f32 %v208, %v241
    %v244 = vmul.f32 %v209, %v241
    %v246 = vlaneseq
    %v247 = vshrl.u32 %v246, 7
    %v248 = vsub.s32 0, %v247
    %v249 = vrot.slane %v236, %v248
    %v251 = vadd.f32 %v243, %v249
    %v252 = vadd.f32 %v244, %v249
    %v253 = vld [vmem:[#allocation9] sm:$0xff]
    %v254 = vld [vmem:[#allocation9 + $0x8] sm:$0xff]
    %v255 = vld [vmem:[#allocation9 + $0x10] sm:$0xff]
    %v256 = vld [vmem:[#allocation9 + $0x18] sm:$0xff]
    %v257 = vld [vmem:[#allocation9 + $0x20] sm:$0xff]
    %v258 = vld [vmem:[#allocation9 + $0x28] sm:$0xff]
    %v259 = vld [vmem:[#allocation9 + $0x30] sm:$0xff]
    %v260 = vld [vmem:[#allocation9 + $0x38] sm:$0xff]
    %v261 = vld [vmem:[#allocation9 + $0x40] sm:$0xff]
    %v262 = vld [vmem:[#allocation9 + $0x48] sm:$0xff]
    %v263 = vld [vmem:[#allocation9 + $0x50] sm:$0xff]
    %v264 = vld [vmem:[#allocation9 + $0x58] sm:$0xff]
    %v265 = vld [vmem:[#allocation9 + $0x60] sm:$0xff]
    %v266 = vld [vmem:[#allocation9 + $0x68] sm:$0xff]
    %v267 = vld [vmem:[#allocation9 + $0x70] sm:$0xff]
    %v268 = vld [vmem:[#allocation9 + $0x78] sm:$0xff]
    %v269 = vld [vmem:[%s6] sm:$0x1]
    %v271 = vlaneseq
    %v272 = vshrl.u32 %v271, 7
    %v273 = vsub.s32 0, %v272
    %v274 = vrot.slane %v269, %v273
    %276 = vmatprep.subr.mxu0 0.0
    %277 = vmatpush1.msra.mxu0 %v253
    %278 = vmatprep.subr.mxu0 0.0
    %279 = vmatpush1.msra.mxu0 %v254
    %280 = vmatprep.subr.mxu0 0.0
    %281 = vmatpush1.msra.mxu0 %v255
    %282 = vmatprep.subr.mxu0 0.0
    %283 = vmatpush1.msra.mxu0 %v256
    %284 = vmatprep.subr.mxu0 0.0
    %285 = vmatpush1.msra.mxu0 %v257
    %286 = vmatprep.subr.mxu0 0.0
    %287 = vmatpush1.msra.mxu0 %v258
    %288 = vmatprep.subr.mxu0 0.0
    %289 = vmatpush1.msra.mxu0 %v259
    %290 = vmatprep.subr.mxu0 0.0
    %291 = vmatpush1.msra.mxu0 %v260
    %292 = vmatprep.subr.mxu0 0.0
    %293 = vmatpush1.msra.mxu0 %v261
    %294 = vmatprep.subr.mxu0 0.0
    %295 = vmatpush1.msra.mxu0 %v262
    %296 = vmatprep.subr.mxu0 0.0
    %297 = vmatpush1.msra.mxu0 %v263
    %298 = vmatprep.subr.mxu0 0.0
    %299 = vmatpush1.msra.mxu0 %v264
    %300 = vmatprep.subr.mxu0 0.0
    %301 = vmatpush1.msra.mxu0 %v265
    %302 = vmatprep.subr.mxu0 0.0
    %303 = vmatpush1.msra.mxu0 %v266
    %304 = vmatprep.subr.mxu0 0.0
    %305 = vmatpush1.msra.mxu0 %v267
    %306 = vmatprep.subr.mxu0 0.0
    %307 = vmatpush1.msra.mxu0 %v268
    %308 = vmatprep.subr.mxu0 0.0
    %309 = vmatpush1.msra.mxu0 0.0
    %310 = vmatprep.subr.mxu0 0.0
    %311 = vmatpush1.msra.mxu0 0.0
    %312 = vmatprep.subr.mxu0 0.0
    %313 = vmatpush1.msra.mxu0 0.0
    %314 = vmatprep.subr.mxu0 0.0
    %315 = vmatpush1.msra.mxu0 0.0
    %316 = vmatprep.subr.mxu0 0.0
    %317 = vmatpush1.msra.mxu0 0.0
    %318 = vmatprep.subr.mxu0 0.0
    %319 = vmatpush1.msra.mxu0 0.0
    %320 = vmatprep.subr.mxu0 0.0
    %321 = vmatpush1.msra.mxu0 0.0
    %322 = vmatprep.subr.mxu0 0.0
    %323 = vmatpush1.msra.mxu0 0.0
    %324 = vmatprep.subr.mxu0 0.0
    %325 = vmatpush1.msra.mxu0 0.0
    %326 = vmatprep.subr.mxu0 0.0
    %327 = vmatpush1.msra.mxu0 0.0
    %328 = vmatprep.subr.mxu0 0.0
    %329 = vmatpush1.msra.mxu0 0.0
    %330 = vmatprep.subr.mxu0 0.0
    %331 = vmatpush1.msra.mxu0 0.0
    %332 = vmatprep.subr.mxu0 0.0
    %333 = vmatpush1.msra.mxu0 0.0
    %334 = vmatprep.subr.mxu0 0.0
    %335 = vmatpush1.msra.mxu0 0.0
    %336 = vmatprep.subr.mxu0 0.0
    %337 = vmatpush1.msra.mxu0 0.0
    %338 = vmatprep.subr.mxu0 0.0
    %339 = vmatpush1.msra.mxu0 0.0
    %340 = vmatprep.mubr.f32.mxu0 0.0
    %341 = vmatmul.mubr.f32.gmra.mrb[0].mxu0 %v251
    %v342 = vpop.f32.mrb[0].mxu0
    %v343 = vadd.f32 %v274, %v342
    %v344 = vpop.f32.mrb[0].mxu0
    %345 = vmatprep.mubr.f32.mxu0 0.0
    %346 = vmatmul.mubr.f32.gmra.mrb[0].mxu0 %v252
    %v347 = vpop.f32.mrb[0].mxu0
    %v348 = vadd.f32 %v274, %v347
    %v349 = vpop.f32.mrb[0].mxu0
    %350 = vdwg.mxu0
    %s351 = sld [smem:[#allocation3]]
    %vm352 = vcmp.gt.f32.partialorder %v343, 0.0
    %vm353 = vcmp.gt.f32.partialorder %v348, 0.0
    %v354 = vstv %s351
    %v355 = vmul.f32 %v354, %v343
    %v356 = vmul.f32 %v354, %v348
    %v357 = vsel %vm352, %v343, %v355
    %v358 = vsel %vm353, %v348, %v356
    %v359 = vadd.f32 %v357, %v358
    %v360 = vrot.slane %v359, 4
    %v361 = vadd.f32 %v359, %v360
    %v362 = vrot.slane %v361, 2
    %v363 = vadd.f32 %v361, %v362
    %v364 = vrot.slane %v363, 1
    %v365 = vadd.f32 %v363, %v364
    %v366 = vmul.f32 %v365, 0.0625
    %v367 = vsub.f32 %v357, %v366
    %v368 = vsub.f32 %v358, %v366
    %v369 = vmul.f32 %v367, %v367
    %v370 = vmul.f32 %v368, %v368
    %v371 = vadd.f32 %v369, %v370
    %v372 = vrot.slane %v371, 4
    %v373 = vadd.f32 %v371, %v372
    %v374 = vrot.slane %v373, 2
    %v375 = vadd.f32 %v373, %v374
    %v376 = vrot.slane %v375, 1
    %v377 = vadd.f32 %v375, %v376
    %v378 = vmul.f32 %v377, 0.0625
    %v379 = vld [vmem:[%s7] sm:$0x1]
    %v380 = vadd.f32 %v378, 1e-05
    %v381 = vrsqrt.pop %v380
    %v382 = vmul.f32 %v379, %v381
    %v383 = vld [vmem:[%s8] sm:$0x1]
    %v384 = vmul.f32 %v366, %v382
    %v385 = vsub.f32 %v383, %v384
    %v387 = vlaneseq
    %v388 = vshrl.u32 %v387, 7
    %v389 = vsub.s32 0, %v388
    %v390 = vrot.slane %v382, %v389
    %v392 = vmul.f32 %v357, %v390
    %v393 = vmul.f32 %v358, %v390
    %v395 = vlaneseq
    %v396 = vshrl.u32 %v395, 7
    %v397 = vsub.s32 0, %v396
    %v398 = vrot.slane %v385, %v397
    %v400 = vadd.f32 %v392, %v398
    %v401 = vadd.f32 %v393, %v398
    %v402 = vld [vmem:[#allocation10] sm:$0xff]
    %v403 = vld [vmem:[#allocation10 + $0x8] sm:$0xff]
    %v404 = vld [vmem:[#allocation10 + $0x10] sm:$0xff]
    %v405 = vld [vmem:[#allocation10 + $0x18] sm:$0xff]
    %v406 = vld [vmem:[#allocation10 + $0x20] sm:$0xff]
    %v407 = vld [vmem:[#allocation10 + $0x28] sm:$0xff]
    %v408 = vld [vmem:[#allocation10 + $0x30] sm:$0xff]
    %v409 = vld [vmem:[#allocation10 + $0x38] sm:$0xff]
    %v410 = vld [vmem:[#allocation10 + $0x40] sm:$0xff]
    %v411 = vld [vmem:[#allocation10 + $0x48] sm:$0xff]
    %v412 = vld [vmem:[#allocation10 + $0x50] sm:$0xff]
    %v413 = vld [vmem:[#allocation10 + $0x58] sm:$0xff]
    %v414 = vld [vmem:[#allocation10 + $0x60] sm:$0xff]
    %v415 = vld [vmem:[#allocation10 + $0x68] sm:$0xff]
    %v416 = vld [vmem:[#allocation10 + $0x70] sm:$0xff]
    %v417 = vld [vmem:[#allocation10 + $0x78] sm:$0xff]
    %v418 = vld [vmem:[%s10] sm:$0x1]
    %v420 = vlaneseq
    %v421 = vshrl.u32 %v420, 7
    %v422 = vsub.s32 0, %v421
    %v423 = vrot.slane %v418, %v422
    %425 = vmatprep.subr.mxu0 0.0
    %426 = vmatpush1.msra.mxu0 %v402
    %427 = vmatprep.subr.mxu0 0.0
    %428 = vmatpush1.msra.mxu0 %v403
    %429 = vmatprep.subr.mxu0 0.0
    %430 = vmatpush1.msra.mxu0 %v404
    %431 = vmatprep.subr.mxu0 0.0
    %432 = vmatpush1.msra.mxu0 %v405
    %433 = vmatprep.subr.mxu0 0.0
    %434 = vmatpush1.msra.mxu0 %v406
    %435 = vmatprep.subr.mxu0 0.0
    %436 = vmatpush1.msra.mxu0 %v407
    %437 = vmatprep.subr.mxu0 0.0
    %438 = vmatpush1.msra.mxu0 %v408
    %439 = vmatprep.subr.mxu0 0.0
    %440 = vmatpush1.msra.mxu0 %v409
    %441 = vmatprep.subr.mxu0 0.0
    %442 = vmatpush1.msra.mxu0 %v410
    %443 = vmatprep.subr.mxu0 0.0
    %444 = vmatpush1.msra.mxu0 %v411
    %445 = vmatprep.subr.mxu0 0.0
    %446 = vmatpush1.msra.mxu0 %v412
    %447 = vmatprep.subr.mxu0 0.0
    %448 = vmatpush1.msra.mxu0 %v413
    %449 = vmatprep.subr.mxu0 0.0
    %450 = vmatpush1.msra.mxu0 %v414
    %451 = vmatprep.subr.mxu0 0.0
    %452 = vmatpush1.msra.mxu0 %v415
    %453 = vmatprep.subr.mxu0 0.0
    %454 = vmatpush1.msra.mxu0 %v416
    %455 = vmatprep.subr.mxu0 0.0
    %456 = vmatpush1.msra.mxu0 %v417
    %457 = vmatprep.subr.mxu0 0.0
    %458 = vmatpush1.msra.mxu0 0.0
    %459 = vmatprep.subr.mxu0 0.0
    %460 = vmatpush1.msra.mxu0 0.0
    %461 = vmatprep.subr.mxu0 0.0
    %462 = vmatpush1.msra.mxu0 0.0
    %463 = vmatprep.subr.mxu0 0.0
    %464 = vmatpush1.msra.mxu0 0.0
    %465 = vmatprep.subr.mxu0 0.0
    %466 = vmatpush1.msra.mxu0 0.0
    %467 = vmatprep.subr.mxu0 0.0
    %468 = vmatpush1.msra.mxu0 0.0
    %469 = vmatprep.subr.mxu0 0.0
    %470 = vmatpush1.msra.mxu0 0.0
    %471 = vmatprep.subr.mxu0 0.0
    %472 = vmatpush1.msra.mxu0 0.0
    %473 = vmatprep.subr.mxu0 0.0
    %474 = vmatpush1.msra.mxu0 0.0
    %475 = vmatprep.subr.mxu0 0.0
    %476 = vmatpush1.msra.mxu0 0.0
    %477 = vmatprep.subr.mxu0 0.0
    %478 = vmatpush1.msra.mxu0 0.0
    %479 = vmatprep.subr.mxu0 0.0
    %480 = vmatpush1.msra.mxu0 0.0
    %481 = vmatprep.subr.mxu0 0.0
    %482 = vmatpush1.msra.mxu0 0.0
    %483 = vmatprep.subr.mxu0 0.0
    %484 = vmatpush1.msra.mxu0 0.0
    %485 = vmatprep.subr.mxu0 0.0
    %486 = vmatpush1.msra.mxu0 0.0
    %487 = vmatprep.subr.mxu0 0.0
    %488 = vmatpush1.msra.mxu0 0.0
    %489 = vmatprep.mubr.f32.mxu0 0.0
    %490 = vmatmul.mubr.f32.gmra.mrb[0].mxu0 %v400
    %v491 = vpop.f32.mrb[0].mxu0
    %v492 = vadd.f32 %v423, %v491
    %v493 = vpop.f32.mrb[0].mxu0
    %494 = vmatprep.mubr.f32.mxu0 0.0
    %495 = vmatmul.mubr.f32.gmra.mrb[0].mxu0 %v401
    %v496 = vpop.f32.mrb[0].mxu0
    %v497 = vadd.f32 %v423, %v496
    %v498 = vpop.f32.mrb[0].mxu0
    %499 = vdwg.mxu0
    %500 = vst [vmem:[#allocation12] sm:$0xff] %v492
    %501 = vst [vmem:[#allocation12 + $0x8] sm:$0xff] %v497
    // Predicated region
    $region70: #{tpu_custom_call.1} parent=1 // pred_check
      _
    $region71: #{tpu_custom_call.1} parent=1 // pred_check_branch
      %503 = sbr.rel (0) target = $region73
    $region72: #{tpu_custom_call.1} parent=1 // pred_region
      %s505 = ssub.s32 256, 256
      %506 = vsyncadd [#allocation6], %s505
      %s507 = sshll.u32 [#allocation12], 4
      %s508 = int_to_ptr.vmem [resolvable:$true] %s507
      %513 = dma.vmem_to_hbm [thread:$0]  %s508, 256, %s13, [#allocation6], 128, 128, 8
    $region73: #{tpu_custom_call.1} parent=1 // pred_fallthru
      _
    // Predicated region
    $region74: #{tpu_custom_call.1} parent=1 // pred_check
      _
    $region75: #{tpu_custom_call.1} parent=1 // pred_check_branch
      %515 = sbr.rel (0) target = $region77
    $region76: #{tpu_custom_call.1} parent=1 // pred_region
      %516 = dma.done [#allocation6], 256
    $region77: #{tpu_custom_call.1} parent=1 // pred_fallthru
      _
    %517 = vsyncpa [#allocation5], 1
    %518 = vsyncpa [#allocation8], 1
    %519 = vsyncpa [#allocation11], 1
    %520 = vsyncpa [#allocation6], 1

</llo_original>
